<compile_context>
chip_gen: v6e
topology: v6e:2x2x1
jax: 0.10.0
libtpu: 0.0.40
codegen_flags: <defaults>
</compile_context>

<pallas_src>
import jax
import jax.numpy as jnp
from jax.experimental import pallas as pl
from jax.experimental.pallas import tpu as pltpu

EPS = 1e-5  # PyTorch LayerNorm default


def _classifier_kernel(x_ref, w1_ref, c1_ref, b1_ref, w2_ref, b2_ref, out_ref):
    # x_ref: [TB, 784] batch tile (f32 or bf16); parameters are grid-resident.
    x_raw = x_ref[...]                                   # [TB, 784]
    x_mm = x_raw.astype(jnp.bfloat16)                    # MXU operand (no-op if bf16)
    xf = x_raw.astype(jnp.float32)                       # f32 view for LN stats

    inv_d = 1.0 / x_ref.shape[-1]

    # --- LayerNorm(784) statistics, single pass, f32 sums ---
    # (inputs are O(1)-scaled activations, so E[x^2]-mu^2 has no cancellation
    #  problem; mu^2 << E[x^2] here)
    mu = jnp.sum(xf, axis=-1, keepdims=True) * inv_d             # [TB, 1]
    ex2 = jnp.sum(xf * xf, axis=-1, keepdims=True) * inv_d        # [TB, 1]
    var = jnp.maximum(ex2 - mu * mu, 0.0)
    inv_sigma = jax.lax.rsqrt(var + EPS)                          # [TB, 1]

    # --- Linear(784 -> 32) with LN1 (affine + normalization) folded in ---
    # ((x - mu) * inv_sigma) @ W1' == inv_sigma * (x @ W1' - mu * colsum(W1'))
    s = jnp.dot(x_mm, w1_ref[...], preferred_element_type=jnp.float32)  # [TB, 32]
    h = (s - mu * c1_ref[...]) * inv_sigma + b1_ref[...]

    # --- LeakyReLU(0.2) ---
    h = jnp.maximum(h, 0.2 * h)

    # --- LayerNorm(32) statistics (affine folded into w2'/b2') ---
    mu2 = jnp.mean(h, axis=-1, keepdims=True)
    hc = h - mu2
    var2 = jnp.mean(hc * hc, axis=-1, keepdims=True)
    hn = hc * jax.lax.rsqrt(var2 + EPS)                           # [TB, 32]

    # --- Linear(32 -> 1) + Tanh: too small for the MXU; VPU mul + lane reduce.
    y = jnp.sum(hn * w2_ref[...], axis=-1, keepdims=True) + b2_ref[...]  # [TB, 1]
    out_ref[...] = jnp.tanh(y).astype(out_ref.dtype)


def fold_params(raw_params):
    """Fold the two LayerNorm affines into the following linear layers.

    Returns (w1f_bf16, colsum_w1f, b1f, w2f, b2f).
    """
    g1, b1, w1, g2, b2, w2 = raw_params
    # w1: [784, 32] (forward is x @ w1), w2: [32, 1]
    w1f = (g1.reshape(-1, 1) * w1).astype(jnp.float32)                 # [784, 32]
    w1f_bf = w1f.astype(jnp.bfloat16)                                  # MXU operand
    # Column sums of the *quantized* weights so the in-kernel fold is exact.
    c1 = jnp.sum(w1f_bf.astype(jnp.float32), axis=0, keepdims=True)    # [1, 32]
    b1f = (b1.reshape(1, -1) @ w1f).astype(jnp.float32)                # [1, 32]  (b1 @ diag(g1) W1 == b1 @ W1')  # noqa: E501
    w2f = (g2.reshape(1, -1) * w2.reshape(1, -1)).astype(jnp.float32)  # [1, 32]
    b2f = (b2.reshape(1, -1) @ w2).astype(jnp.float32)                 # [1, 1]
    return w1f_bf, c1, b1f, w2f, b2f


def classifier_forward(img, folded_params, *, block_b=2048):
    """img: [B, 784] (f32 or bf16) -> [B, 1] float32."""
    B, D = img.shape
    assert D == 784
    w1f, c1, b1f, w2f, b2f = folded_params

    # Batch tile: big enough to amortize per-step overhead, small enough that
    # double-buffered tiles fit v7x's 64 MiB VMEM.  Guarantee >= 2 grid steps
    # whenever possible so "parallel" can shard across both v7x TensorCores.
    tb = min(block_b, B)
    if B >= 16 and tb >= B:
        tb = ((B + 1) // 2 + 7) // 8 * 8
    if tb < B:
        tb = max(8, (tb // 8) * 8)           # sublane-aligned batch tile
    grid = (pl.cdiv(B, tb),)

    const2d = lambda shape: pl.BlockSpec(shape, lambda i: (0, 0))
    itemsize = jnp.dtype(img.dtype).itemsize

    cost = pl.CostEstimate(
        flops=int(2 * B * D * 32 + 16 * B * 32),
        transcendentals=int(3 * B),                      # 2 rsqrt + 1 tanh per row
        bytes_accessed=int(B * D * itemsize + B * 4
                           + D * 32 * 2 + (4 * 32 + 1) * 4),
    )

    return pl.pallas_call(
        _classifier_kernel,
        out_shape=jax.ShapeDtypeStruct((B, 1), jnp.float32),
        grid_spec=pl.GridSpec(
            grid=grid,
            in_specs=[
                pl.BlockSpec((tb, D), lambda i: (i, 0)),   # x tile (pipelined)
                const2d((D, 32)),                          # W1' (bf16) = diag(g1) W1
                const2d((1, 32)),                          # colsum(W1')
                const2d((1, 32)),                          # b1' = b1 @ W1'
                const2d((1, 32)),                          # w2' = g2 ⊙ w2
                const2d((1, 1)),                           # b2' = b2 @ w2
            ],
            out_specs=pl.BlockSpec((tb, 1), lambda i: (i, 0)),
        ),
        compiler_params=pltpu.CompilerParams(
            dimension_semantics=("parallel",),     # rows independent -> 2 TCs on v7x
            vmem_limit_bytes=48 * 1024 * 1024,     # fits v7x's 64 MiB physical VMEM
        ),
        cost_estimate=cost,
    )(img, w1f, c1, b1f, w2f, b2f)


def init_raw_params(key):
    """Deterministic synthetic parameters matching lin_pred_model shapes."""
    k1, k2, k3, k4 = jax.random.split(key, 4)
    g1 = (1.0 + 0.01 * jax.random.normal(k1, (1, 784))).astype(jnp.float32)
    b1 = (0.01 * jax.random.normal(k2, (1, 784))).astype(jnp.float32)
    w1 = (jax.random.normal(k3, (784, 32)) / jnp.sqrt(784.0)).astype(jnp.float32)
    g2 = jnp.ones((1, 32), jnp.float32)
    b2 = jnp.zeros((1, 32), jnp.float32)
    w2 = (jax.random.normal(k4, (32, 1)) / jnp.sqrt(32.0)).astype(jnp.float32)
    return g1, b1, w1, g2, b2, w2


def _reference(img, raw_params):
    """Pure-JAX f32 reference with the un-folded (PyTorch-layout) parameters."""
    g1, b1, w1, g2, b2, w2 = raw_params
    x = img.astype(jnp.float32)
    mu = x.mean(-1, keepdims=True)
    var = ((x - mu) ** 2).mean(-1, keepdims=True)
    x = (x - mu) / jnp.sqrt(var + EPS) * g1 + b1
    h = x @ w1
    h = jnp.where(h >= 0, h, 0.2 * h)
    mu2 = h.mean(-1, keepdims=True)
    var2 = ((h - mu2) ** 2).mean(-1, keepdims=True)
    h = (h - mu2) / jnp.sqrt(var2 + EPS) * g2 + b2
    return jnp.tanh(h @ w2)


if __name__ == "__main__":
    key = jax.random.PRNGKey(0)
    kx, kp = jax.random.split(key)

    B = 16
    img = jax.random.normal(kx, (B, 784), dtype=jnp.float32)
    raw = init_raw_params(kp)
    folded = fold_params(raw)
    ref = _reference(img, raw)

    # f32 input path (block_b=8 -> grid=(2,), exercises pipelining + dual-core
    # sharding); matmul operands are cast to bf16 in-kernel (f32 accumulation).
    out = classifier_forward(img, folded, block_b=8)
    out = jax.block_until_ready(out)
    assert out.shape == (B, 1)
    assert jnp.allclose(out, ref, atol=2.5e-2, rtol=0.0), (out, ref)

    # bf16 HBM-stream path (recommended fast path; halves the dominant x read).
    out_bf = classifier_forward(img.astype(jnp.bfloat16), folded)
    out_bf = jax.block_until_ready(out_bf)
    assert out_bf.shape == (B, 1)
    assert jnp.allclose(out_bf, ref, atol=7e-2, rtol=0.0), (out_bf, ref)

    print("KERNEL_OK")
</pallas_src>

<mosaic_0001>
module attributes {stable_mosaic.version = 11 : i64} {
  func.func @_classifier_kernel(%arg0: i32, %arg1: memref<8x784xf32, #tpu.memory_space<vmem>>, %arg2: memref<784x32xbf16, #tpu.memory_space<vmem>>, %arg3: memref<1x32xf32, #tpu.memory_space<vmem>>, %arg4: memref<1x32xf32, #tpu.memory_space<vmem>>, %arg5: memref<1x32xf32, #tpu.memory_space<vmem>>, %arg6: memref<1x1xf32, #tpu.memory_space<vmem>>, %arg7: memref<8x1xf32, #tpu.memory_space<vmem>>) attributes {dimension_semantics = [#tpu.dimension_semantics<parallel>], iteration_bounds = array<i64: 2>, scalar_prefetch = 0 : i64, scratch_operands = 0 : i64, tpu.core_type = #tpu.core_type<tc>, window_params = [{transform_indices = @transform_0, window_bounds = array<i64: 8, 784>}, {pipeline_mode = #tpu.pipeline_mode<synchronous>, transform_indices = @transform_1, window_bounds = array<i64: 784, 32>}, {pipeline_mode = #tpu.pipeline_mode<synchronous>, transform_indices = @transform_2, window_bounds = array<i64: 1, 32>}, {pipeline_mode = #tpu.pipeline_mode<synchronous>, transform_indices = @transform_3, window_bounds = array<i64: 1, 32>}, {pipeline_mode = #tpu.pipeline_mode<synchronous>, transform_indices = @transform_4, window_bounds = array<i64: 1, 32>}, {pipeline_mode = #tpu.pipeline_mode<synchronous>, transform_indices = @transform_5, window_bounds = array<i64: 1, 1>}, {transform_indices = @transform_6, window_bounds = array<i64: 8, 1>}]} {
    %c0 = arith.constant 0 : index
    %c0_0 = arith.constant 0 : index
    %0 = vector.load %arg1[%c0, %c0_0] : memref<8x784xf32, #tpu.memory_space<vmem>>, vector<8x784xf32>
    %1 = arith.truncf %0 : vector<8x784xf32> to vector<8x784xbf16>
    %cst = arith.constant dense<0.000000e+00> : vector<8xf32>
    %2 = vector.multi_reduction <add>, %0, %cst [1] : vector<8x784xf32> to vector<8xf32>
    %3 = vector.shape_cast %2 : vector<8xf32> to vector<8x1xf32>
    %cst_1 = arith.constant 0.00127551018 : f32
    %4 = vector.broadcast %cst_1 : f32 to vector<8x1xf32>
    %5 = arith.mulf %3, %4 : vector<8x1xf32>
    %6 = arith.mulf %0, %0 : vector<8x784xf32>
    %cst_2 = arith.constant dense<0.000000e+00> : vector<8xf32>
    %7 = vector.multi_reduction <add>, %6, %cst_2 [1] : vector<8x784xf32> to vector<8xf32>
    %8 = vector.shape_cast %7 : vector<8xf32> to vector<8x1xf32>
    %cst_3 = arith.constant 0.00127551018 : f32
    %9 = vector.broadcast %cst_3 : f32 to vector<8x1xf32>
    %10 = arith.mulf %8, %9 : vector<8x1xf32>
    %11 = arith.mulf %5, %5 : vector<8x1xf32>
    %12 = arith.subf %10, %11 : vector<8x1xf32>
    %cst_4 = arith.constant 0.000000e+00 : f32
    %13 = vector.broadcast %cst_4 : f32 to vector<8x1xf32>
    %14 = arith.maximumf %12, %13 : vector<8x1xf32>
    %cst_5 = arith.constant 9.99999974E-6 : f32
    %15 = vector.broadcast %cst_5 : f32 to vector<8x1xf32>
    %16 = arith.addf %14, %15 : vector<8x1xf32>
    %17 = math.rsqrt %16 : vector<8x1xf32>
    %c0_6 = arith.constant 0 : index
    %c0_7 = arith.constant 0 : index
    %18 = vector.load %arg2[%c0_6, %c0_7] : memref<784x32xbf16, #tpu.memory_space<vmem>>, vector<784x32xbf16>
    %cst_8 = arith.constant dense<0.000000e+00> : vector<8x32xf32>
    %19 = tpu.matmul %1, %18, %cst_8 {dimension_numbers = #tpu.dot_dimension_numbers<[1], [0], [0], [1], [0, 0, 1, 1], [], []>} : vector<8x784xbf16>, vector<784x32xbf16>, vector<8x32xf32> -> vector<8x32xf32>
    %c0_9 = arith.constant 0 : index
    %c0_10 = arith.constant 0 : index
    %20 = vector.load %arg3[%c0_9, %c0_10] : memref<1x32xf32, #tpu.memory_space<vmem>>, vector<1x32xf32>
    %21 = vector.broadcast %5 : vector<8x1xf32> to vector<8x32xf32>
    %22 = vector.broadcast %20 : vector<1x32xf32> to vector<8x32xf32>
    %23 = arith.mulf %21, %22 : vector<8x32xf32>
    %24 = arith.subf %19, %23 : vector<8x32xf32>
    %25 = vector.broadcast %17 : vector<8x1xf32> to vector<8x32xf32>
    %26 = arith.mulf %24, %25 : vector<8x32xf32>
    %c0_11 = arith.constant 0 : index
    %c0_12 = arith.constant 0 : index
    %27 = vector.load %arg4[%c0_11, %c0_12] : memref<1x32xf32, #tpu.memory_space<vmem>>, vector<1x32xf32>
    %28 = vector.broadcast %27 : vector<1x32xf32> to vector<8x32xf32>
    %29 = arith.addf %26, %28 : vector<8x32xf32>
    %cst_13 = arith.constant 2.000000e-01 : f32
    %30 = vector.broadcast %cst_13 : f32 to vector<8x32xf32>
    %31 = arith.mulf %30, %29 : vector<8x32xf32>
    %32 = arith.maximumf %29, %31 : vector<8x32xf32>
    %cst_14 = arith.constant dense<0.000000e+00> : vector<8xf32>
    %33 = vector.multi_reduction <add>, %32, %cst_14 [1] : vector<8x32xf32> to vector<8xf32>
    %34 = vector.shape_cast %33 : vector<8xf32> to vector<8x1xf32>
    %cst_15 = arith.constant 3.200000e+01 : f32
    %35 = vector.broadcast %cst_15 : f32 to vector<8x1xf32>
    %36 = arith.divf %34, %35 : vector<8x1xf32>
    %37 = vector.broadcast %36 : vector<8x1xf32> to vector<8x32xf32>
    %38 = arith.subf %32, %37 : vector<8x32xf32>
    %39 = arith.mulf %38, %38 : vector<8x32xf32>
    %cst_16 = arith.constant dense<0.000000e+00> : vector<8xf32>
    %40 = vector.multi_reduction <add>, %39, %cst_16 [1] : vector<8x32xf32> to vector<8xf32>
    %41 = vector.shape_cast %40 : vector<8xf32> to vector<8x1xf32>
    %cst_17 = arith.constant 3.200000e+01 : f32
    %42 = vector.broadcast %cst_17 : f32 to vector<8x1xf32>
    %43 = arith.divf %41, %42 : vector<8x1xf32>
    %cst_18 = arith.constant 9.99999974E-6 : f32
    %44 = vector.broadcast %cst_18 : f32 to vector<8x1xf32>
    %45 = arith.addf %43, %44 : vector<8x1xf32>
    %46 = math.rsqrt %45 : vector<8x1xf32>
    %47 = vector.broadcast %46 : vector<8x1xf32> to vector<8x32xf32>
    %48 = arith.mulf %38, %47 : vector<8x32xf32>
    %c0_19 = arith.constant 0 : index
    %c0_20 = arith.constant 0 : index
    %49 = vector.load %arg5[%c0_19, %c0_20] : memref<1x32xf32, #tpu.memory_space<vmem>>, vector<1x32xf32>
    %50 = vector.broadcast %49 : vector<1x32xf32> to vector<8x32xf32>
    %51 = arith.mulf %48, %50 : vector<8x32xf32>
    %cst_21 = arith.constant dense<0.000000e+00> : vector<8xf32>
    %52 = vector.multi_reduction <add>, %51, %cst_21 [1] : vector<8x32xf32> to vector<8xf32>
    %53 = vector.shape_cast %52 : vector<8xf32> to vector<8x1xf32>
    %c0_22 = arith.constant 0 : index
    %c0_23 = arith.constant 0 : index
    %54 = vector.load %arg6[%c0_22, %c0_23] : memref<1x1xf32, #tpu.memory_space<vmem>>, vector<1x1xf32>
    %55 = vector.broadcast %54 : vector<1x1xf32> to vector<8x1xf32>
    %56 = arith.addf %53, %55 : vector<8x1xf32>
    %57 = math.tanh %56 : vector<8x1xf32>
    %c0_24 = arith.constant 0 : index
    %c0_25 = arith.constant 0 : index
    %58 = vector.load %arg7[%c0_24, %c0_25] : memref<8x1xf32, #tpu.memory_space<vmem>>, vector<8x1xf32>
    tpu.vector_store %arg7[%c0_24, %c0_25], %57 {strides = array<i32>} : memref<8x1xf32, #tpu.memory_space<vmem>>, vector<8x1xf32>,
    return
  }
  func.func @transform_0(%arg0: i32) -> (i32, i32) {
    %c0_i32 = arith.constant 0 : i32
    %c0_i32_0 = arith.constant 0 : i32
    return %arg0, %c0_i32 : i32, i32
  }
  func.func @transform_1(%arg0: i32) -> (i32, i32) {
    %c0_i32 = arith.constant 0 : i32
    %c0_i32_0 = arith.constant 0 : i32
    %c0_i32_1 = arith.constant 0 : i32
    return %c0_i32, %c0_i32_0 : i32, i32
  }
  func.func @transform_2(%arg0: i32) -> (i32, i32) {
    %c0_i32 = arith.constant 0 : i32
    %c0_i32_0 = arith.constant 0 : i32
    %c0_i32_1 = arith.constant 0 : i32
    return %c0_i32, %c0_i32_0 : i32, i32
  }
  func.func @transform_3(%arg0: i32) -> (i32, i32) {
    %c0_i32 = arith.constant 0 : i32
    %c0_i32_0 = arith.constant 0 : i32
    %c0_i32_1 = arith.constant 0 : i32
    return %c0_i32, %c0_i32_0 : i32, i32
  }
  func.func @transform_4(%arg0: i32) -> (i32, i32) {
    %c0_i32 = arith.constant 0 : i32
    %c0_i32_0 = arith.constant 0 : i32
    %c0_i32_1 = arith.constant 0 : i32
    return %c0_i32, %c0_i32_0 : i32, i32
  }
  func.func @transform_5(%arg0: i32) -> (i32, i32) {
    %c0_i32 = arith.constant 0 : i32
    %c0_i32_0 = arith.constant 0 : i32
    %c0_i32_1 = arith.constant 0 : i32
    return %c0_i32, %c0_i32_0 : i32, i32
  }
  func.func @transform_6(%arg0: i32) -> (i32, i32) {
    %c0_i32 = arith.constant 0 : i32
    %c0_i32_0 = arith.constant 0 : i32
    return %arg0, %c0_i32 : i32, i32
  }
}

</mosaic_0001>

<llo_original>
// kernel: tpu_custom_call.1
$region0: #{tpu_custom_call.1}
  #allocation0 [shape = 'u32[]', space=smem, size = 0x4, offset = 0x4, fixed_abs, tag = 'smem constant byte address 0x4 - core index']
  #allocation1 [shape = 'u32[144,128]{1,0:T(1,128)}', space=vmem, size = 0x12000, scoped, tag = 'internal scratch']
  #allocation2 [shape = 'f32[1,1]{1,0:T(1,128)S(1)}', space=vmem, size = 0x200, scoped, tag = 'scoped memory for tpu_custom_call.1']
  %s0 = inlined_call_operand.vmem [shape: f32[16,784], index: 0, kind: input, shape index: {}]
  %s1 = inlined_call_operand.vmem [shape: bf16[784,32], index: 1, kind: input, shape index: {}]
  %s2 = inlined_call_operand.vmem [shape: f32[1,32], index: 2, kind: input, shape index: {}]
  %s3 = inlined_call_operand.vmem [shape: f32[1,32], index: 3, kind: input, shape index: {}]
  %s4 = inlined_call_operand.vmem [shape: f32[1,32], index: 4, kind: input, shape index: {}]
  %s5 = inlined_call_operand.<no memory space> [shape: f32[1,1], index: 5, kind: input, shape index: {}]
  %s6 = inlined_call_operand.vmem [shape: f32[16,1], index: 6, kind: output, shape index: {}]
  %s7 = sld [smem:[#allocation0]]
  $region57: #{tpu_custom_call.1} parent=0
    _
  %s9 = ssub.s32 1, %s7
  %s10 = scalar_select 0, %s9, %s7
  %v11 = vstv %s5
  %12 = vst [vmem:[#allocation2] sm:$0x1] %v11
  loop: start=0, step=1, limit=4
  $region2: #{tpu_custom_call.1} parent=0 // loop_pre_header
    _
  $region3: #{tpu_custom_call.1} parent=0 // loop_header
    %s14 = sphi 0, %s18
    %p15 = scmp.ge.s32.totalorder %s14, 4
    %s24 = sphi 0, %s26
    %s27 = sphi 0, %s24
    %s28 = sphi 0, %s27
    %s44 = sphi 0, %s28
    %s48 = sphi 0, %s48
    %s50 = sphi 0, %s48
    %s51 = sphi 0, %s50
    %s65 = sphi 0, %s51
    %s69 = sphi 0, %s69
    %s71 = sphi 0, %s69
    %s72 = sphi 0, %s71
    %s86 = sphi 0, %s72
    %s90 = sphi 0, %s90
    %s92 = sphi 0, %s90
    %s93 = sphi 0, %s92
    %s107 = sphi 0, %s93
    %s111 = sphi 0, %s111
    %s113 = sphi 0, %s111
    %s114 = sphi 0, %s113
    %s128 = sphi 0, %s114
    %s132 = sphi 0, %s132
    %s134 = sphi 0, %s132
    %s135 = sphi 0, %s134
    %s149 = sphi 0, %s135
    %s155 = sphi 0, %s157
    %s158 = sphi 0, %s155
    %s159 = sphi 0, %s158
    %s175 = sphi 0, %s159
  $region4: #{tpu_custom_call.1} parent=0 // loop_header_branch
    %17 = sbr.rel (%p15) target = $region8
  $region5: #{tpu_custom_call.1} parent=0 // loop_body
    %s19 = ssub.s32 %s14, 1
    %s20 = ssub.s32 %s14, 2
    %s21 = sadd.s32 %s14, 1
    %s22 = ssub.s32 %s14, %s21
    %p23 = scmp.eq.s32.totalorder %s22, 0
    %s25 = sadd.s32 %s24, 1
    %s26 = scalar_select %p23, %s24, %s25
    %p29 = pneg %p23
    %p30 = scmp.eq.s32.totalorder %s14, 1
    %p31 = por %p29, %p30
    %p32 = scmp.ne.s32.totalorder %s24, %s27
    %p33 = scmp.eq.s32.totalorder %s14, 0
    %p34 = por %p32, %p33
    %p35 = scmp.ne.s32.totalorder %s24, %s27
    %p36 = scmp.eq.s32.totalorder %s19, 1
    %p37 = por %p35, %p36
    %p38 = scmp.ne.s32.totalorder %s27, %s28
    %p39 = scmp.eq.s32.totalorder %s19, 0
    %p40 = por %p38, %p39
    %p41 = scmp.ne.s32.totalorder %s27, %s28
    %p42 = scmp.eq.s32.totalorder %s20, 1
    %p43 = por %p41, %p42
    %p45 = scmp.ne.s32.totalorder %s28, %s44
    %p46 = scmp.eq.s32.totalorder %s20, 0
    %p47 = por %p45, %p46
    %s49 = sadd.s32 %s48, 1
    %p52 = scmp.eq.s32.totalorder %s14, 1
    %p53 = scmp.ne.s32.totalorder %s48, %s50
    %p54 = scmp.eq.s32.totalorder %s14, 0
    %p55 = por %p53, %p54
    %p56 = scmp.ne.s32.totalorder %s48, %s50
    %p57 = scmp.eq.s32.totalorder %s19, 1
    %p58 = por %p56, %p57
    %p59 = scmp.ne.s32.totalorder %s50, %s51
    %p60 = scmp.eq.s32.totalorder %s19, 0
    %p61 = por %p59, %p60
    %p62 = scmp.ne.s32.totalorder %s50, %s51
    %p63 = scmp.eq.s32.totalorder %s20, 1
    %p64 = por %p62, %p63
    %p66 = scmp.ne.s32.totalorder %s51, %s65
    %p67 = scmp.eq.s32.totalorder %s20, 0
    %p68 = por %p66, %p67
    %s70 = sadd.s32 %s69, 1
    %p73 = scmp.eq.s32.totalorder %s14, 1
    %p74 = scmp.ne.s32.totalorder %s69, %s71
    %p75 = scmp.eq.s32.totalorder %s14, 0
    %p76 = por %p74, %p75
    %p77 = scmp.ne.s32.totalorder %s69, %s71
    %p78 = scmp.eq.s32.totalorder %s19, 1
    %p79 = por %p77, %p78
    %p80 = scmp.ne.s32.totalorder %s71, %s72
    %p81 = scmp.eq.s32.totalorder %s19, 0
    %p82 = por %p80, %p81
    %p83 = scmp.ne.s32.totalorder %s71, %s72
    %p84 = scmp.eq.s32.totalorder %s20, 1
    %p85 = por %p83, %p84
    %p87 = scmp.ne.s32.totalorder %s72, %s86
    %p88 = scmp.eq.s32.totalorder %s20, 0
    %p89 = por %p87, %p88
    %s91 = sadd.s32 %s90, 1
    %p94 = scmp.eq.s32.totalorder %s14, 1
    %p95 = scmp.ne.s32.totalorder %s90, %s92
    %p96 = scmp.eq.s32.totalorder %s14, 0
    %p97 = por %p95, %p96
    %p98 = scmp.ne.s32.totalorder %s90, %s92
    %p99 = scmp.eq.s32.totalorder %s19, 1
    %p100 = por %p98, %p99
    %p101 = scmp.ne.s32.totalorder %s92, %s93
    %p102 = scmp.eq.s32.totalorder %s19, 0
    %p103 = por %p101, %p102
    %p104 = scmp.ne.s32.totalorder %s92, %s93
    %p105 = scmp.eq.s32.totalorder %s20, 1
    %p106 = por %p104, %p105
    %p108 = scmp.ne.s32.totalorder %s93, %s107
    %p109 = scmp.eq.s32.totalorder %s20, 0
    %p110 = por %p108, %p109
    %s112 = sadd.s32 %s111, 1
    %p115 = scmp.eq.s32.totalorder %s14, 1
    %p116 = scmp.ne.s32.totalorder %s111, %s113
    %p117 = scmp.eq.s32.totalorder %s14, 0
    %p118 = por %p116, %p117
    %p119 = scmp.ne.s32.totalorder %s111, %s113
    %p120 = scmp.eq.s32.totalorder %s19, 1
    %p121 = por %p119, %p120
    %p122 = scmp.ne.s32.totalorder %s113, %s114
    %p123 = scmp.eq.s32.totalorder %s19, 0
    %p124 = por %p122, %p123
    %p125 = scmp.ne.s32.totalorder %s113, %s114
    %p126 = scmp.eq.s32.totalorder %s20, 1
    %p127 = por %p125, %p126
    %p129 = scmp.ne.s32.totalorder %s114, %s128
    %p130 = scmp.eq.s32.totalorder %s20, 0
    %p131 = por %p129, %p130
    %s133 = sadd.s32 %s132, 1
    %p136 = scmp.eq.s32.totalorder %s14, 1
    %p137 = scmp.ne.s32.totalorder %s132, %s134
    %p138 = scmp.eq.s32.totalorder %s14, 0
    %p139 = por %p137, %p138
    %p140 = scmp.ne.s32.totalorder %s132, %s134
    %p141 = scmp.eq.s32.totalorder %s19, 1
    %p142 = por %p140, %p141
    %p143 = scmp.ne.s32.totalorder %s134, %s135
    %p144 = scmp.eq.s32.totalorder %s19, 0
    %p145 = por %p143, %p144
    %p146 = scmp.ne.s32.totalorder %s134, %s135
    %p147 = scmp.eq.s32.totalorder %s20, 1
    %p148 = por %p146, %p147
    %p150 = scmp.ne.s32.totalorder %s135, %s149
    %p151 = scmp.eq.s32.totalorder %s20, 0
    %p152 = por %p150, %p151
    %s153 = ssub.s32 %s14, %s21
    %p154 = scmp.eq.s32.totalorder %s153, 0
    %s156 = sadd.s32 %s155, 1
    %s157 = scalar_select %p154, %s155, %s156
    %p160 = pneg %p154
    %p161 = scmp.eq.s32.totalorder %s14, 1
    %p162 = por %p160, %p161
    %p163 = scmp.ne.s32.totalorder %s155, %s158
    %p164 = scmp.eq.s32.totalorder %s14, 0
    %p165 = por %p163, %p164
    %p166 = scmp.ne.s32.totalorder %s155, %s158
    %p167 = scmp.eq.s32.totalorder %s19, 1
    %p168 = por %p166, %p167
    %p169 = scmp.ne.s32.totalorder %s158, %s159
    %p170 = scmp.eq.s32.totalorder %s19, 0
    %p171 = por %p169, %p170
    %p172 = scmp.ne.s32.totalorder %s158, %s159
    %p173 = scmp.eq.s32.totalorder %s20, 1
    %p174 = por %p172, %p173
    %p176 = scmp.ne.s32.totalorder %s159, %s175
    %p177 = scmp.eq.s32.totalorder %s20, 0
    %p178 = por %p176, %p177
    %p179 = scmp.le.s32.totalorder 1, %s14
    %p180 = scmp.lt.s32.totalorder %s14, 3
    %p181 = pnand %p179, %p180
    %p182 = pneg %p181
    // Predicated region
    $region9: #{tpu_custom_call.1} parent=5 // pred_check
      _
    $region10: #{tpu_custom_call.1} parent=5 // pred_check_branch
      %184 = sbr.rel (%p181) target = $region12
    $region11: #{tpu_custom_call.1} parent=5 // pred_region
      %s185 = ssub.s32 %s14, 1
      // Predicated region
      $region13: #{tpu_custom_call.1} parent=11 // pred_check
        %p186 = pneg %p61
      $region14: #{tpu_custom_call.1} parent=11 // pred_check_branch
        %188 = sbr.rel (%p186) target = $region16
      $region15: #{tpu_custom_call.1} parent=11 // pred_region
        _
      $region16: #{tpu_custom_call.1} parent=11 // pred_fallthru
        _
      // Predicated region
      $region17: #{tpu_custom_call.1} parent=11 // pred_check
        %p189 = pneg %p82
      $region18: #{tpu_custom_call.1} parent=11 // pred_check_branch
        %191 = sbr.rel (%p189) target = $region20
      $region19: #{tpu_custom_call.1} parent=11 // pred_region
        _
      $region20: #{tpu_custom_call.1} parent=11 // pred_fallthru
        _
      // Predicated region
      $region21: #{tpu_custom_call.1} parent=11 // pred_check
        %p192 = pneg %p103
      $region22: #{tpu_custom_call.1} parent=11 // pred_check_branch
        %194 = sbr.rel (%p192) target = $region24
      $region23: #{tpu_custom_call.1} parent=11 // pred_region
        _
      $region24: #{tpu_custom_call.1} parent=11 // pred_fallthru
        _
      // Predicated region
      $region25: #{tpu_custom_call.1} parent=11 // pred_check
        %p195 = pneg %p124
      $region26: #{tpu_custom_call.1} parent=11 // pred_check_branch
        %197 = sbr.rel (%p195) target = $region28
      $region27: #{tpu_custom_call.1} parent=11 // pred_region
        _
      $region28: #{tpu_custom_call.1} parent=11 // pred_fallthru
        _
      // Predicated region
      $region29: #{tpu_custom_call.1} parent=11 // pred_check
        %p198 = pneg %p145
      $region30: #{tpu_custom_call.1} parent=11 // pred_check_branch
        %200 = sbr.rel (%p198) target = $region32
      $region31: #{tpu_custom_call.1} parent=11 // pred_region
        _
      $region32: #{tpu_custom_call.1} parent=11 // pred_fallthru
        _
    $region12: #{tpu_custom_call.1} parent=5 // pred_fallthru
      _
    %p201 = scmp.lt.s32.totalorder %s14, 2
    // Predicated region
    $region33: #{tpu_custom_call.1} parent=5 // pred_check
      %p202 = pneg %p201
    $region34: #{tpu_custom_call.1} parent=5 // pred_check_branch
      %204 = sbr.rel (%p202) target = $region36
    $region35: #{tpu_custom_call.1} parent=5 // pred_region
      // Predicated region
      $region37: #{tpu_custom_call.1} parent=35 // pred_check
        %p205 = pneg %p34
      $region38: #{tpu_custom_call.1} parent=35 // pred_check_branch
        %207 = sbr.rel (%p205) target = $region40
      $region39: #{tpu_custom_call.1} parent=35 // pred_region
        %p208 = scmp.lt.s32.totalorder %s14, 1
        %s209 = scalar_select %p208, %s14, 1
        %s210 = smul.addr %s209, 7
        %s211 = smul.addr %s210, 8
        %s212 = scalar_lea.vmem %s0, %s211
      $region40: #{tpu_custom_call.1} parent=35 // pred_fallthru
        _
    $region36: #{tpu_custom_call.1} parent=5 // pred_fallthru
      _
    %p213 = scmp.le.s32.totalorder 1, %s14
    %p214 = scmp.lt.s32.totalorder %s14, 3
    %p215 = pnand %p213, %p214
    %p216 = pneg %p215
    // Predicated region
    $region41: #{tpu_custom_call.1} parent=5 // pred_check
      _
    $region42: #{tpu_custom_call.1} parent=5 // pred_check_branch
      %218 = sbr.rel (%p215) target = $region44
    $region43: #{tpu_custom_call.1} parent=5 // pred_region
      %s219 = ssub.s32 %s14, 1
      %p220 = scmp.lt.s32.totalorder %s19, 1
      %s221 = scalar_select %p220, %s19, 1
      %s222 = smul.addr %s221, 7
      %s223 = smul.addr %s222, 8
      %s224 = scalar_lea.vmem %s0, %s223
      %p225 = pneg %p40
      %p226 = pneg %p37
      %p227 = pneg %p61
      %p228 = pneg %p58
      %p229 = pneg %p82
      %p230 = pneg %p79
      %p231 = pneg %p103
      %p232 = pneg %p100
      %p233 = pneg %p124
      %p234 = pneg %p121
      %p235 = pneg %p145
      %p236 = pneg %p142
      %p237 = pneg %p171
      %p238 = pneg %p168
      %p239 = scmp.lt.s32.totalorder %s19, 1
      %s240 = scalar_select %p239, %s19, 1
      %s241 = smul.addr %s240, 8
      %s242 = scalar_lea.vmem %s6, %s241
      %p243 = scmp.lt.s32.totalorder %s19, 1
      %s244 = scalar_select %p243, %s19, 1
      %s245 = smul.addr %s244, 7
      %s246 = smul.addr %s245, 8
      %s247 = scalar_lea.vmem %s0, %s246
      %p248 = scmp.lt.s32.totalorder %s19, 1
      %s249 = scalar_select %p248, %s19, 1
      %s250 = smul.addr %s249, 8
      %s251 = scalar_lea.vmem %s6, %s250
      %v253 = vld [vmem:[%s247] sm:$0xff]
      %v254 = vld [vmem:[%s247 + $0x8] sm:$0xff]
      %v255 = vld [vmem:[%s247 + $0x10] sm:$0xff]
      %v256 = vld [vmem:[%s247 + $0x18] sm:$0xff]
      %v257 = vld [vmem:[%s247 + $0x20] sm:$0xff]
      %v258 = vld [vmem:[%s247 + $0x28] sm:$0xff]
      %v259 = vld [vmem:[%s247 + $0x30] sm:$0xff]
      %v260 = vpack.c.bf16 %v253, %v253
      %v261 = vpack.c.bf16 %v254, %v254
      %v262 = vpack.c.bf16 %v255, %v255
      %v263 = vpack.c.bf16 %v256, %v256
      %v264 = vpack.c.bf16 %v257, %v257
      %v265 = vpack.c.bf16 %v258, %v258
      %v266 = vpack.c.bf16 %v259, %v259
      %v267 = vadd.f32 %v253, %v254
      %v268 = vadd.f32 %v267, %v255
      %v269 = vadd.f32 %v268, %v256
      %v270 = vadd.f32 %v269, %v257
      %v271 = vadd.f32 %v270, %v258
      %vm272 = vcmask 130048
      %v273 = vsel %vm272, %v259, 0.0
      %v274 = vadd.f32 %v271, %v273
      %275 = vadd.xlane.f32.xlu0 %v274
      %v276 = vpop.xlane.xlu0 %275
      %v277 = vmul.f32 %v276, 0.0012755102
      %v278 = vmul.f32 %v253, %v253
      %v279 = vmul.f32 %v254, %v254
      %v280 = vmul.f32 %v255, %v255
      %v281 = vmul.f32 %v256, %v256
      %v282 = vmul.f32 %v257, %v257
      %v283 = vmul.f32 %v258, %v258
      %v284 = vmul.f32 %v259, %v259
      %v285 = vadd.f32 %v278, %v279
      %v286 = vadd.f32 %v285, %v280
      %v287 = vadd.f32 %v286, %v281
      %v288 = vadd.f32 %v287, %v282
      %v289 = vadd.f32 %v288, %v283
      %v290 = vsel %vm272, %v284, 0.0
      %v291 = vadd.f32 %v289, %v290
      %292 = vadd.xlane.f32.xlu0 %v291
      %v293 = vpop.xlane.xlu0 %292
      %v294 = vmul.f32 %v293, 0.0012755102
      %v295 = vmul.f32 %v277, %v277
      %v296 = vsub.f32 %v294, %v295
      %v297 = vmax.f32 %v296, 0.0
      %v298 = vadd.f32 %v297, 1e-05
      %v299 = vrsqrt.pop %v298
      %v300 = vld [vmem:[%s1] sm:$0xf]
      %v301 = vld [vmem:[%s1 + $0x4] sm:$0xf]
      %v302 = vld [vmem:[%s1 + $0x8] sm:$0xf]
      %v303 = vld [vmem:[%s1 + $0xc] sm:$0xf]
      %v304 = vld [vmem:[%s1 + $0x10] sm:$0xf]
      %v305 = vld [vmem:[%s1 + $0x14] sm:$0xf]
      %v306 = vld [vmem:[%s1 + $0x18] sm:$0xf]
      %v307 = vld [vmem:[%s1 + $0x1c] sm:$0xf]
      %v308 = vld [vmem:[%s1 + $0x20] sm:$0xf]
      %v309 = vld [vmem:[%s1 + $0x24] sm:$0xf]
      %v310 = vld [vmem:[%s1 + $0x28] sm:$0xf]
      %v311 = vld [vmem:[%s1 + $0x2c] sm:$0xf]
      %v312 = vld [vmem:[%s1 + $0x30] sm:$0xf]
      %v313 = vld [vmem:[%s1 + $0x34] sm:$0xf]
      %v314 = vld [vmem:[%s1 + $0x38] sm:$0xf]
      %v315 = vld [vmem:[%s1 + $0x3c] sm:$0xf]
      %v316 = vld [vmem:[%s1 + $0x40] sm:$0xf]
      %v317 = vld [vmem:[%s1 + $0x44] sm:$0xf]
      %v318 = vld [vmem:[%s1 + $0x48] sm:$0xf]
      %v319 = vld [vmem:[%s1 + $0x4c] sm:$0xf]
      %v320 = vld [vmem:[%s1 + $0x50] sm:$0xf]
      %v321 = vld [vmem:[%s1 + $0x54] sm:$0xf]
      %v322 = vld [vmem:[%s1 + $0x58] sm:$0xf]
      %v323 = vld [vmem:[%s1 + $0x5c] sm:$0xf]
      %v324 = vld [vmem:[%s1 + $0x60] sm:$0xf]
      %v325 = vld [vmem:[%s1 + $0x64] sm:$0xf]
      %v326 = vld [vmem:[%s1 + $0x68] sm:$0xf]
      %v327 = vld [vmem:[%s1 + $0x6c] sm:$0xf]
      %v328 = vld [vmem:[%s1 + $0x70] sm:$0xf]
      %v329 = vld [vmem:[%s1 + $0x74] sm:$0xf]
      %v330 = vld [vmem:[%s1 + $0x78] sm:$0xf]
      %v331 = vld [vmem:[%s1 + $0x7c] sm:$0xf]
      %v332 = vld [vmem:[%s1 + $0x80] sm:$0xf]
      %v333 = vld [vmem:[%s1 + $0x84] sm:$0xf]
      %v334 = vld [vmem:[%s1 + $0x88] sm:$0xf]
      %v335 = vld [vmem:[%s1 + $0x8c] sm:$0xf]
      %v336 = vld [vmem:[%s1 + $0x90] sm:$0xf]
      %v337 = vld [vmem:[%s1 + $0x94] sm:$0xf]
      %v338 = vld [vmem:[%s1 + $0x98] sm:$0xf]
      %v339 = vld [vmem:[%s1 + $0x9c] sm:$0xf]
      %v340 = vld [vmem:[%s1 + $0xa0] sm:$0xf]
      %v341 = vld [vmem:[%s1 + $0xa4] sm:$0xf]
      %v342 = vld [vmem:[%s1 + $0xa8] sm:$0xf]
      %v343 = vld [vmem:[%s1 + $0xac] sm:$0xf]
      %v344 = vld [vmem:[%s1 + $0xb0] sm:$0xf]
      %v345 = vld [vmem:[%s1 + $0xb4] sm:$0xf]
      %v346 = vld [vmem:[%s1 + $0xb8] sm:$0xf]
      %v347 = vld [vmem:[%s1 + $0xbc] sm:$0xf]
      %v348 = vld [vmem:[%s1 + $0xc0] sm:$0xf]
      %v349 = vld [vmem:[%s1 + $0xc4] sm:$0xf]
      %v350 = vld [vmem:[%s1 + $0xc8] sm:$0xf]
      %v351 = vld [vmem:[%s1 + $0xcc] sm:$0xf]
      %v352 = vld [vmem:[%s1 + $0xd0] sm:$0xf]
      %v353 = vld [vmem:[%s1 + $0xd4] sm:$0xf]
      %v354 = vld [vmem:[%s1 + $0xd8] sm:$0xf]
      %v355 = vld [vmem:[%s1 + $0xdc] sm:$0xf]
      %v356 = vld [vmem:[%s1 + $0xe0] sm:$0xf]
      %v357 = vld [vmem:[%s1 + $0xe4] sm:$0xf]
      %v358 = vld [vmem:[%s1 + $0xe8] sm:$0xf]
      %v359 = vld [vmem:[%s1 + $0xec] sm:$0xf]
      %v360 = vld [vmem:[%s1 + $0xf0] sm:$0xf]
      %v361 = vld [vmem:[%s1 + $0xf4] sm:$0xf]
      %v362 = vld [vmem:[%s1 + $0xf8] sm:$0xf]
      %v363 = vld [vmem:[%s1 + $0xfc] sm:$0xf]
      %v364 = vld [vmem:[%s1 + $0x100] sm:$0xf]
      %v365 = vld [vmem:[%s1 + $0x104] sm:$0xf]
      %v366 = vld [vmem:[%s1 + $0x108] sm:$0xf]
      %v367 = vld [vmem:[%s1 + $0x10c] sm:$0xf]
      %v368 = vld [vmem:[%s1 + $0x110] sm:$0xf]
      %v369 = vld [vmem:[%s1 + $0x114] sm:$0xf]
      %v370 = vld [vmem:[%s1 + $0x118] sm:$0xf]
      %v371 = vld [vmem:[%s1 + $0x11c] sm:$0xf]
      %v372 = vld [vmem:[%s1 + $0x120] sm:$0xf]
      %v373 = vld [vmem:[%s1 + $0x124] sm:$0xf]
      %v374 = vld [vmem:[%s1 + $0x128] sm:$0xf]
      %v375 = vld [vmem:[%s1 + $0x12c] sm:$0xf]
      %v376 = vld [vmem:[%s1 + $0x130] sm:$0xf]
      %v377 = vld [vmem:[%s1 + $0x134] sm:$0xf]
      %v378 = vld [vmem:[%s1 + $0x138] sm:$0xf]
      %v379 = vld [vmem:[%s1 + $0x13c] sm:$0xf]
      %v380 = vld [vmem:[%s1 + $0x140] sm:$0xf]
      %v381 = vld [vmem:[%s1 + $0x144] sm:$0xf]
      %v382 = vld [vmem:[%s1 + $0x148] sm:$0xf]
      %v383 = vld [vmem:[%s1 + $0x14c] sm:$0xf]
      %v384 = vld [vmem:[%s1 + $0x150] sm:$0xf]
      %v385 = vld [vmem:[%s1 + $0x154] sm:$0xf]
      %v386 = vld [vmem:[%s1 + $0x158] sm:$0xf]
      %v387 = vld [vmem:[%s1 + $0x15c] sm:$0xf]
      %v388 = vld [vmem:[%s1 + $0x160] sm:$0xf]
      %v389 = vld [vmem:[%s1 + $0x164] sm:$0xf]
      %v390 = vld [vmem:[%s1 + $0x168] sm:$0xf]
      %v391 = vld [vmem:[%s1 + $0x16c] sm:$0xf]
      %v392 = vld [vmem:[%s1 + $0x170] sm:$0xf]
      %v393 = vld [vmem:[%s1 + $0x174] sm:$0xf]
      %v394 = vld [vmem:[%s1 + $0x178] sm:$0xf]
      %v395 = vld [vmem:[%s1 + $0x17c] sm:$0xf]
      %v396 = vld [vmem:[%s1 + $0x180] sm:$0xf]
      %v397 = vld [vmem:[%s1 + $0x184] sm:$0xf]
      %v496 = vunpack.c.l.b16 %v300
      %v497 = vunpack.c.l.b16 %v301
      %v498 = vunpack.c.l.b16 %v302
      %v499 = vunpack.c.l.b16 %v303
      %v500 = vunpack.c.l.b16 %v304
      %v501 = vunpack.c.l.b16 %v305
      %v502 = vunpack.c.l.b16 %v306
      %v503 = vunpack.c.l.b16 %v307
      %v504 = vunpack.c.l.b16 %v308
      %v505 = vunpack.c.l.b16 %v309
      %v506 = vunpack.c.l.b16 %v310
      %v507 = vunpack.c.l.b16 %v311
      %v508 = vunpack.c.l.b16 %v312
      %v509 = vunpack.c.l.b16 %v313
      %v510 = vunpack.c.l.b16 %v314
      %v511 = vunpack.c.l.b16 %v315
      %v512 = vunpack.c.l.b16 %v316
      %v513 = vunpack.c.l.b16 %v317
      %v514 = vunpack.c.l.b16 %v318
      %v515 = vunpack.c.l.b16 %v319
      %v516 = vunpack.c.l.b16 %v320
      %v517 = vunpack.c.l.b16 %v321
      %v518 = vunpack.c.l.b16 %v322
      %v519 = vunpack.c.l.b16 %v323
      %v520 = vunpack.c.l.b16 %v324
      %v521 = vunpack.c.l.b16 %v325
      %v522 = vunpack.c.l.b16 %v326
      %v523 = vunpack.c.l.b16 %v327
      %v524 = vunpack.c.l.b16 %v328
      %v525 = vunpack.c.l.b16 %v329
      %v526 = vunpack.c.l.b16 %v330
      %v527 = vunpack.c.l.b16 %v331
      %v528 = vunpack.c.l.b16 %v332
      %v529 = vunpack.c.l.b16 %v333
      %v530 = vunpack.c.l.b16 %v334
      %v531 = vunpack.c.l.b16 %v335
      %v532 = vunpack.c.l.b16 %v336
      %v533 = vunpack.c.l.b16 %v337
      %v534 = vunpack.c.l.b16 %v338
      %v535 = vunpack.c.l.b16 %v339
      %v536 = vunpack.c.l.b16 %v340
      %v537 = vunpack.c.l.b16 %v341
      %v538 = vunpack.c.l.b16 %v342
      %v539 = vunpack.c.l.b16 %v343
      %v540 = vunpack.c.l.b16 %v344
      %v541 = vunpack.c.l.b16 %v345
      %v542 = vunpack.c.l.b16 %v346
      %v543 = vunpack.c.l.b16 %v347
      %v544 = vunpack.c.l.b16 %v348
      %v545 = vunpack.c.l.b16 %v349
      %v546 = vunpack.c.l.b16 %v350
      %v547 = vunpack.c.l.b16 %v351
      %v548 = vunpack.c.l.b16 %v352
      %v549 = vunpack.c.l.b16 %v353
      %v550 = vunpack.c.l.b16 %v354
      %v551 = vunpack.c.l.b16 %v355
      %v552 = vunpack.c.l.b16 %v356
      %v553 = vunpack.c.l.b16 %v357
      %v554 = vunpack.c.l.b16 %v358
      %v555 = vunpack.c.l.b16 %v359
      %v556 = vunpack.c.l.b16 %v360
      %v557 = vunpack.c.l.b16 %v361
      %v558 = vunpack.c.l.b16 %v362
      %v559 = vunpack.c.l.b16 %v363
      %v560 = vunpack.c.l.b16 %v364
      %v561 = vunpack.c.l.b16 %v365
      %v562 = vunpack.c.l.b16 %v366
      %v563 = vunpack.c.l.b16 %v367
      %v564 = vunpack.c.l.b16 %v368
      %v565 = vunpack.c.l.b16 %v369
      %v566 = vunpack.c.l.b16 %v370
      %v567 = vunpack.c.l.b16 %v371
      %v568 = vunpack.c.l.b16 %v372
      %v569 = vunpack.c.l.b16 %v373
      %v570 = vunpack.c.l.b16 %v374
      %v571 = vunpack.c.l.b16 %v375
      %v572 = vunpack.c.l.b16 %v376
      %v573 = vunpack.c.l.b16 %v377
      %v574 = vunpack.c.l.b16 %v378
      %v575 = vunpack.c.l.b16 %v379
      %v576 = vunpack.c.l.b16 %v380
      %v577 = vunpack.c.l.b16 %v381
      %v578 = vunpack.c.l.b16 %v382
      %v579 = vunpack.c.l.b16 %v383
      %v580 = vunpack.c.l.b16 %v384
      %v581 = vunpack.c.l.b16 %v385
      %v582 = vunpack.c.l.b16 %v386
      %v583 = vunpack.c.l.b16 %v387
      %v584 = vunpack.c.l.b16 %v388
      %v585 = vunpack.c.l.b16 %v389
      %v586 = vunpack.c.l.b16 %v390
      %v587 = vunpack.c.l.b16 %v391
      %v588 = vunpack.c.l.b16 %v392
      %v589 = vunpack.c.l.b16 %v393
      %v590 = vunpack.c.l.b16 %v394
      %v591 = vunpack.c.l.b16 %v395
      %v592 = vunpack.c.l.b16 %v396
      %v593 = vunpack.c.l.b16 %v397
      %v594 = vpack.c.b16 %v497, %v496
      %v595 = vpack.c.b16 %v499, %v498
      %v596 = vpack.c.b16 %v501, %v500
      %v597 = vpack.c.b16 %v503, %v502
      %v598 = vpack.c.b16 %v505, %v504
      %v599 = vpack.c.b16 %v507, %v506
      %v600 = vpack.c.b16 %v509, %v508
      %v601 = vpack.c.b16 %v511, %v510
      %v602 = vpack.c.b16 %v513, %v512
      %v603 = vpack.c.b16 %v515, %v514
      %v604 = vpack.c.b16 %v517, %v516
      %v605 = vpack.c.b16 %v519, %v518
      %v606 = vpack.c.b16 %v521, %v520
      %v607 = vpack.c.b16 %v523, %v522
      %v608 = vpack.c.b16 %v525, %v524
      %v609 = vpack.c.b16 %v527, %v526
      %v610 = vpack.c.b16 %v529, %v528
      %v611 = vpack.c.b16 %v531, %v530
      %v612 = vpack.c.b16 %v533, %v532
      %v613 = vpack.c.b16 %v535, %v534
      %v614 = vpack.c.b16 %v537, %v536
      %v615 = vpack.c.b16 %v539, %v538
      %v616 = vpack.c.b16 %v541, %v540
      %v617 = vpack.c.b16 %v543, %v542
      %v618 = vpack.c.b16 %v545, %v544
      %v619 = vpack.c.b16 %v547, %v546
      %v620 = vpack.c.b16 %v549, %v548
      %v621 = vpack.c.b16 %v551, %v550
      %v622 = vpack.c.b16 %v553, %v552
      %v623 = vpack.c.b16 %v555, %v554
      %v624 = vpack.c.b16 %v557, %v556
      %v625 = vpack.c.b16 %v559, %v558
      %v626 = vpack.c.b16 %v561, %v560
      %v627 = vpack.c.b16 %v563, %v562
      %v628 = vpack.c.b16 %v565, %v564
      %v629 = vpack.c.b16 %v567, %v566
      %v630 = vpack.c.b16 %v569, %v568
      %v631 = vpack.c.b16 %v571, %v570
      %v632 = vpack.c.b16 %v573, %v572
      %v633 = vpack.c.b16 %v575, %v574
      %v634 = vpack.c.b16 %v577, %v576
      %v635 = vpack.c.b16 %v579, %v578
      %v636 = vpack.c.b16 %v581, %v580
      %v637 = vpack.c.b16 %v583, %v582
      %v638 = vpack.c.b16 %v585, %v584
      %v639 = vpack.c.b16 %v587, %v586
      %v640 = vpack.c.b16 %v589, %v588
      %v641 = vpack.c.b16 %v591, %v590
      %v642 = vpack.c.b16 %v593, %v592
      %v693 = vsel %vm272, %v266, 0
      %695 = vmatprep.subr.bf16.mxu0 0
      %696 = vmatpush1.bf16.msra.mxu0 %v601
      %697 = vmatprep.subr.bf16.mxu0 0
      %698 = vmatpush1.bf16.msra.mxu0 %v600
      %699 = vmatprep.subr.bf16.mxu0 0
      %700 = vmatpush1.bf16.msra.mxu0 %v599
      %701 = vmatprep.subr.bf16.mxu0 0
      %702 = vmatpush1.bf16.msra.mxu0 %v598
      %703 = vmatprep.subr.bf16.mxu0 0
      %704 = vmatpush1.bf16.msra.mxu0 %v597
      %705 = vmatprep.subr.bf16.mxu0 0
      %706 = vmatpush1.bf16.msra.mxu0 %v596
      %707 = vmatprep.subr.bf16.mxu0 0
      %708 = vmatpush1.bf16.msra.mxu0 %v595
      %709 = vmatprep.subr.bf16.mxu0 0
      %710 = vmatpush1.bf16.msra.mxu0 %v594
      %711 = vmatprep.subr.bf16.mxu0 0
      %712 = vmatpush2.bf16.msra.mxu0 %v609
      %713 = vmatprep.subr.bf16.mxu0 0
      %714 = vmatpush2.bf16.msra.mxu0 %v608
      %715 = vmatprep.subr.bf16.mxu0 0
      %716 = vmatpush2.bf16.msra.mxu0 %v607
      %717 = vmatprep.subr.bf16.mxu0 0
      %718 = vmatpush2.bf16.msra.mxu0 %v606
      %719 = vmatprep.subr.bf16.mxu0 0
      %720 = vmatpush2.bf16.msra.mxu0 %v605
      %721 = vmatprep.subr.bf16.mxu0 0
      %722 = vmatpush2.bf16.msra.mxu0 %v604
      %723 = vmatprep.subr.bf16.mxu0 0
      %724 = vmatpush2.bf16.msra.mxu0 %v603
      %725 = vmatprep.subr.bf16.mxu0 0
      %726 = vmatpush2.bf16.msra.mxu0 %v602
      %727 = vmatprep.mubr.bf16.mxu0 %v261
      %728 = vmatmul.mubr.bf16.gmra.mxu0 %v260
      %v729 = vpop.f32.mrf.mxu0
      %v730 = vadd.f32 0.0, %v729
      %v731 = vpop.f32.mrf.mxu0
      %v732 = vpop.f32.mrf.mxu0
      %v733 = vpop.f32.mrf.mxu0
      %734 = vdwg.mxu0
      %735 = vmatprep.subr.bf16.mxu0 0
      %736 = vmatpush1.bf16.msra.mxu0 %v617
      %737 = vmatprep.subr.bf16.mxu0 0
      %738 = vmatpush1.bf16.msra.mxu0 %v616
      %739 = vmatprep.subr.bf16.mxu0 0
      %740 = vmatpush1.bf16.msra.mxu0 %v615
      %741 = vmatprep.subr.bf16.mxu0 0
      %742 = vmatpush1.bf16.msra.mxu0 %v614
      %743 = vmatprep.subr.bf16.mxu0 0
      %744 = vmatpush1.bf16.msra.mxu0 %v613
      %745 = vmatprep.subr.bf16.mxu0 0
      %746 = vmatpush1.bf16.msra.mxu0 %v612
      %747 = vmatprep.subr.bf16.mxu0 0
      %748 = vmatpush1.bf16.msra.mxu0 %v611
      %749 = vmatprep.subr.bf16.mxu0 0
      %750 = vmatpush1.bf16.msra.mxu0 %v610
      %751 = vmatprep.subr.bf16.mxu0 0
      %752 = vmatpush2.bf16.msra.mxu0 %v625
      %753 = vmatprep.subr.bf16.mxu0 0
      %754 = vmatpush2.bf16.msra.mxu0 %v624
      %755 = vmatprep.subr.bf16.mxu0 0
      %756 = vmatpush2.bf16.msra.mxu0 %v623
      %757 = vmatprep.subr.bf16.mxu0 0
      %758 = vmatpush2.bf16.msra.mxu0 %v622
      %759 = vmatprep.subr.bf16.mxu0 0
      %760 = vmatpush2.bf16.msra.mxu0 %v621
      %761 = vmatprep.subr.bf16.mxu0 0
      %762 = vmatpush2.bf16.msra.mxu0 %v620
      %763 = vmatprep.subr.bf16.mxu0 0
      %764 = vmatpush2.bf16.msra.mxu0 %v619
      %765 = vmatprep.subr.bf16.mxu0 0
      %766 = vmatpush2.bf16.msra.mxu0 %v618
      %767 = vmatprep.mubr.bf16.mxu0 %v263
      %768 = vmatmul.mubr.bf16.gmra.mxu0 %v262
      %v769 = vpop.f32.mrf.mxu0
      %v770 = vadd.f32 %v730, %v769
      %v771 = vpop.f32.mrf.mxu0
      %v772 = vpop.f32.mrf.mxu0
      %v773 = vpop.f32.mrf.mxu0
      %774 = vdwg.mxu0
      %775 = vmatprep.subr.bf16.mxu0 0
      %776 = vmatpush1.bf16.msra.mxu0 %v633
      %777 = vmatprep.subr.bf16.mxu0 0
      %778 = vmatpush1.bf16.msra.mxu0 %v632
      %779 = vmatprep.subr.bf16.mxu0 0
      %780 = vmatpush1.bf16.msra.mxu0 %v631
      %781 = vmatprep.subr.bf16.mxu0 0
      %782 = vmatpush1.bf16.msra.mxu0 %v630
      %783 = vmatprep.subr.bf16.mxu0 0
      %784 = vmatpush1.bf16.msra.mxu0 %v629
      %785 = vmatprep.subr.bf16.mxu0 0
      %786 = vmatpush1.bf16.msra.mxu0 %v628
      %787 = vmatprep.subr.bf16.mxu0 0
      %788 = vmatpush1.bf16.msra.mxu0 %v627
      %789 = vmatprep.subr.bf16.mxu0 0
      %790 = vmatpush1.bf16.msra.mxu0 %v626
      %791 = vmatprep.subr.bf16.mxu0 0
      %792 = vmatpush2.bf16.msra.mxu0 %v641
      %793 = vmatprep.subr.bf16.mxu0 0
      %794 = vmatpush2.bf16.msra.mxu0 %v640
      %795 = vmatprep.subr.bf16.mxu0 0
      %796 = vmatpush2.bf16.msra.mxu0 %v639
      %797 = vmatprep.subr.bf16.mxu0 0
      %798 = vmatpush2.bf16.msra.mxu0 %v638
      %799 = vmatprep.subr.bf16.mxu0 0
      %800 = vmatpush2.bf16.msra.mxu0 %v637
      %801 = vmatprep.subr.bf16.mxu0 0
      %802 = vmatpush2.bf16.msra.mxu0 %v636
      %803 = vmatprep.subr.bf16.mxu0 0
      %804 = vmatpush2.bf16.msra.mxu0 %v635
      %805 = vmatprep.subr.bf16.mxu0 0
      %806 = vmatpush2.bf16.msra.mxu0 %v634
      %807 = vmatprep.mubr.bf16.mxu0 %v265
      %808 = vmatmul.mubr.bf16.gmra.mxu0 %v264
      %v809 = vpop.f32.mrf.mxu0
      %v810 = vadd.f32 %v770, %v809
      %v811 = vpop.f32.mrf.mxu0
      %v812 = vpop.f32.mrf.mxu0
      %v813 = vpop.f32.mrf.mxu0
      %814 = vdwg.mxu0
      %815 = vmatprep.subr.bf16.mxu0 0
      %816 = vmatpush1.bf16.msra.mxu0 0
      %817 = vmatprep.subr.bf16.mxu0 0
      %818 = vmatpush1.bf16.msra.mxu0 0
      %819 = vmatprep.subr.bf16.mxu0 0
      %820 = vmatpush1.bf16.msra.mxu0 0
      %821 = vmatprep.subr.bf16.mxu0 0
      %822 = vmatpush1.bf16.msra.mxu0 0
      %823 = vmatprep.subr.bf16.mxu0 0
      %824 = vmatpush1.bf16.msra.mxu0 0
      %825 = vmatprep.subr.bf16.mxu0 0
      %826 = vmatpush1.bf16.msra.mxu0 0
      %827 = vmatprep.subr.bf16.mxu0 0
      %828 = vmatpush1.bf16.msra.mxu0 0
      %829 = vmatprep.subr.bf16.mxu0 0
      %830 = vmatpush1.bf16.msra.mxu0 %v642
      %831 = vmatprep.subr.bf16.mxu0 0
      %832 = vmatpush2.bf16.msra.mxu0 0
      %833 = vmatprep.subr.bf16.mxu0 0
      %834 = vmatpush2.bf16.msra.mxu0 0
      %835 = vmatprep.subr.bf16.mxu0 0
      %836 = vmatpush2.bf16.msra.mxu0 0
      %837 = vmatprep.subr.bf16.mxu0 0
      %838 = vmatpush2.bf16.msra.mxu0 0
      %839 = vmatprep.subr.bf16.mxu0 0
      %840 = vmatpush2.bf16.msra.mxu0 0
      %841 = vmatprep.subr.bf16.mxu0 0
      %842 = vmatpush2.bf16.msra.mxu0 0
      %843 = vmatprep.subr.bf16.mxu0 0
      %844 = vmatpush2.bf16.msra.mxu0 0
      %845 = vmatprep.subr.bf16.mxu0 0
      %846 = vmatpush2.bf16.msra.mxu0 0
      %847 = vmatprep.mubr.bf16.mxu0 0
      %848 = vmatmul.mubr.bf16.gmra.mxu0 %v693
      %v849 = vpop.f32.mrf.mxu0
      %v850 = vadd.f32 %v810, %v849
      %v851 = vpop.f32.mrf.mxu0
      %v852 = vpop.f32.mrf.mxu0
      %v853 = vpop.f32.mrf.mxu0
      %854 = vdwg.mxu0
      %v855 = vld [vmem:[%s2] sm:$0x1]
      %v857 = vlaneseq
      %v858 = vshrl.u32 %v857, 7
      %v859 = vsub.s32 0, %v858
      %v860 = vrot.slane %v855, %v859
      %v862 = vmul.f32 %v277, %v860
      %v863 = vsub.f32 %v850, %v862
      %v864 = vmul.f32 %v863, %v299
      %v865 = vld [vmem:[%s3] sm:$0x1]
      %v867 = vlaneseq
      %v868 = vshrl.u32 %v867, 7
      %v869 = vsub.s32 0, %v868
      %v870 = vrot.slane %v865, %v869
      %v872 = vadd.f32 %v864, %v870
      %v873 = vmul.f32 %v872, 0.2
      %v874 = vmax.f32 %v872, %v873
      %vm875 = vcmask 261120
      %v876 = vsel %vm875, %v874, 0.0
      %877 = vadd.xlane.f32.xlu0 %v876
      %v878 = vpop.xlane.xlu0 %877
      %v879 = vrcp.pop 32.0
      %v880 = vmul.f32 %v878, %v879
      %v881 = vsub.f32 %v874, %v880
      %v882 = vmul.f32 %v881, %v881
      %v883 = vsel %vm875, %v882, 0.0
      %884 = vadd.xlane.f32.xlu0 %v883
      %v885 = vpop.xlane.xlu0 %884
      %v886 = vmul.f32 %v885, %v879
      %v887 = vadd.f32 %v886, 1e-05
      %v888 = vrsqrt.pop %v887
      %v889 = vmul.f32 %v881, %v888
      %v890 = vld [vmem:[%s4] sm:$0x1]
      %v892 = vlaneseq
      %v893 = vshrl.u32 %v892, 7
      %v894 = vsub.s32 0, %v893
      %v895 = vrot.slane %v890, %v894
      %v897 = vmul.f32 %v889, %v895
      %v898 = vsel %vm875, %v897, 0.0
      %899 = vadd.xlane.f32.xlu0 %v898
      %v900 = vpop.xlane.xlu0 %899
      %v901 = vld [vmem:[#allocation2] sm:$0x1]
      %v903 = vlaneseq
      %v904 = vshrl.u32 %v903, 7
      %v905 = vsub.s32 0, %v904
      %v906 = vrot.slane %v901, %v905
      %v908 = vadd.f32 %v900, %v906
      %v909 = vtanh.pop %v908
      %vm910 = vcmask 7168
      %911 = vst.msk [vmem:[%s251] sm:$0xff] %vm910, %v909
      %p912 = scmp.lt.s32.totalorder %s19, 1
      %s913 = scalar_select %p912, %s19, 1
      %s914 = smul.addr %s913, 8
      %s915 = scalar_lea.vmem %s6, %s914
      // Predicated region
      $region45: #{tpu_custom_call.1} parent=43 // pred_check
        %p916 = pneg %p168
      $region46: #{tpu_custom_call.1} parent=43 // pred_check_branch
        %918 = sbr.rel (%p916) target = $region48
      $region47: #{tpu_custom_call.1} parent=43 // pred_region
        _
      $region48: #{tpu_custom_call.1} parent=43 // pred_fallthru
        _
    $region44: #{tpu_custom_call.1} parent=5 // pred_fallthru
      _
    %p919 = scmp.le.s32.totalorder 2, %s14
    // Predicated region
    $region49: #{tpu_custom_call.1} parent=5 // pred_check
      %p920 = pneg %p919
    $region50: #{tpu_custom_call.1} parent=5 // pred_check_branch
      %922 = sbr.rel (%p920) target = $region52
    $region51: #{tpu_custom_call.1} parent=5 // pred_region
      %s923 = ssub.s32 %s14, 2
      // Predicated region
      $region53: #{tpu_custom_call.1} parent=51 // pred_check
        %p924 = pneg %p174
      $region54: #{tpu_custom_call.1} parent=51 // pred_check_branch
        %926 = sbr.rel (%p924) target = $region56
      $region55: #{tpu_custom_call.1} parent=51 // pred_region
        %p927 = scmp.lt.s32.totalorder %s20, 1
        %s928 = scalar_select %p927, %s20, 1
        %s929 = smul.addr %s928, 8
        %s930 = scalar_lea.vmem %s6, %s929
      $region56: #{tpu_custom_call.1} parent=51 // pred_fallthru
        _
    $region52: #{tpu_custom_call.1} parent=5 // pred_fallthru
      _
  $region6: #{tpu_custom_call.1} parent=0 // loop_footer
    %s18 = sadd.s32 1, %s14
  $region7: #{tpu_custom_call.1} parent=0 // loop_footer_branch
    %13 = sbr.rel target = $region3
  $region8: #{tpu_custom_call.1} parent=0 // loop_exit
    _

</llo_original>
